<compile_context>
chip_gen: v7x
topology: tpu7x:2x2x1
jax: 0.10.0
libtpu: 0.0.40
codegen_flags: <defaults>
</compile_context>

<pallas_src>
import jax
import jax.numpy as jnp
from jax.experimental import pallas as pl
from jax.experimental.pallas import tpu as pltpu


# ---------------------------------------------------------------------------
# Pallas kernel: fc1 -> tanh -> fc2 -> tanh -> fused (alpha|beta) head
# ---------------------------------------------------------------------------
def actor_beta_kernel(s_ref, w1_ref, b1_ref, w2_ref, b2_ref, wh_ref, bh_ref,
                      out_ref):
    # fc1 + tanh  (bf16 MXU operands, f32 accumulate; nonlinearity in f32)
    h1 = jnp.tanh(
        jnp.dot(s_ref[...].astype(jnp.bfloat16), w1_ref[...],
                preferred_element_type=jnp.float32) + b1_ref[...])

    # fc2 + tanh
    h2 = jnp.tanh(
        jnp.dot(h1.astype(jnp.bfloat16), w2_ref[...],
                preferred_element_type=jnp.float32) + b2_ref[...])

    # fused alpha|beta head (exactly 2*action_dim lanes, no padding)
    z = jnp.dot(h2.astype(jnp.bfloat16), wh_ref[...],
                preferred_element_type=jnp.float32) + bh_ref[...]

    # numerically stable softplus(z) + 1 = logaddexp(z, 0) + 1
    out_ref[...] = jnp.logaddexp(z, 0.0) + 1.0


# ---------------------------------------------------------------------------
# Wrapper
# ---------------------------------------------------------------------------
def _round_up(x, m):
    return ((x + m - 1) // m) * m


def actor_beta_forward(s, params):
    """params: dict with bf16 w1/w2/w_head, f32 b1/b2/b_head, 'action_dim'."""
    batch, state_dim = s.shape
    hidden = params["w1"].shape[1]
    wh, bh = params["w_head"], params["b_head"]
    n_out = wh.shape[1]                       # 2 * action_dim
    action_dim = params["action_dim"]

    # Batch tile: multiple of 8 sublanes.  Small batches -> one tile covering
    # the whole batch; large batches -> cap at 512 rows, keeping >= 2 grid
    # steps so v7x's two TensorCores both get work.
    if batch <= 512:
        tm = _round_up(batch, 8)
    else:
        tm = min(512, _round_up(pl.cdiv(batch, 2), 8))
    grid_m = pl.cdiv(batch, tm)

    row_map = lambda i: (i, 0)                # streamed activation / output
    const_map = lambda i: (0, 0)              # weights/biases stay in VMEM

    out = pl.pallas_call(
        actor_beta_kernel,
        out_shape=jax.ShapeDtypeStruct((batch, n_out), jnp.float32),
        grid_spec=pltpu.PrefetchScalarGridSpec(
            num_scalar_prefetch=0,
            grid=(grid_m,),
            in_specs=[
                pl.BlockSpec((tm, state_dim), row_map),
                pl.BlockSpec((state_dim, hidden), const_map),
                pl.BlockSpec((1, hidden), const_map),
                pl.BlockSpec((hidden, hidden), const_map),
                pl.BlockSpec((1, hidden), const_map),
                pl.BlockSpec((hidden, n_out), const_map),
                pl.BlockSpec((1, n_out), const_map),
            ],
            out_specs=pl.BlockSpec((tm, n_out), row_map),
        ),
        compiler_params=pltpu.CompilerParams(
            dimension_semantics=("parallel",)),
    )(s, params["w1"], params["b1"], params["w2"], params["b2"], wh, bh)

    alpha = out[:, :action_dim]
    beta = out[:, action_dim:]
    return alpha, beta


# ---------------------------------------------------------------------------
# Deterministic orthogonal init (mirrors nn.init.orthogonal_ semantics)
# ---------------------------------------------------------------------------
def orthogonal_weight(key, out_features, in_features, gain=1.0):
    """Return a torch-style (out, in) orthogonal weight."""
    rows, cols = out_features, in_features
    a = jax.random.normal(key, (rows, cols), dtype=jnp.float32)
    transposed = rows < cols
    if transposed:
        a = a.T
    q, r = jnp.linalg.qr(a)
    d = jnp.diagonal(r)
    d = jnp.where(d == 0, 1.0, jnp.sign(d))   # avoid zeroing a column if diag==0
    q = q * d[None, :]
    if transposed:
        q = q.T
    return gain * q  # shape (out, in)


def make_params(key, state_dim, hidden_width, action_dim):
    ks = jax.random.split(key, 4)
    w1_t = orthogonal_weight(ks[0], hidden_width, state_dim, gain=1.0)
    w2_t = orthogonal_weight(ks[1], hidden_width, hidden_width, gain=1.0)
    wa_t = orthogonal_weight(ks[2], action_dim, hidden_width, gain=0.01)
    wb_t = orthogonal_weight(ks[3], action_dim, hidden_width, gain=0.01)

    w1 = w1_t.T                               # (state, hidden) f32
    w2 = w2_t.T                               # (hidden, hidden) f32
    wa = wa_t.T                               # (hidden, A) f32
    wb = wb_t.T                               # (hidden, A) f32
    ba = jnp.zeros((1, action_dim), jnp.float32)
    bb = jnp.zeros((1, action_dim), jnp.float32)

    # Fused head: exactly 2*action_dim output columns, no lane padding.
    w_head = jnp.concatenate([wa, wb], axis=1)          # (hidden, 2A)
    b_head = jnp.concatenate([ba, bb], axis=1)          # (1, 2A)

    return {
        # bf16 MXU operands (f32 accumulation happens in the kernel)
        "w1": w1.astype(jnp.bfloat16),
        "w2": w2.astype(jnp.bfloat16),
        "w_head": w_head.astype(jnp.bfloat16),
        # biases stay f32 (added after the f32-accumulated matmul)
        "b1": jnp.zeros((1, hidden_width), jnp.float32),
        "b2": jnp.zeros((1, hidden_width), jnp.float32),
        "b_head": b_head,
        # full-precision copies for the pure-JAX reference check
        "w1_f32": w1, "w2_f32": w2, "wa": wa, "ba": ba, "wb": wb, "bb": bb,
        "action_dim": action_dim,
    }


# ---------------------------------------------------------------------------
# Reference (pure JAX, f32) for sanity check
# ---------------------------------------------------------------------------
def actor_beta_ref(s, p):
    h1 = jnp.tanh(s @ p["w1_f32"] + p["b1"])
    h2 = jnp.tanh(h1 @ p["w2_f32"] + p["b2"])
    alpha = jax.nn.softplus(h2 @ p["wa"] + p["ba"]) + 1.0
    beta = jax.nn.softplus(h2 @ p["wb"] + p["bb"]) + 1.0
    return alpha, beta


if __name__ == "__main__":
    batch = 8
    state_dim = 16
    hidden_width = 32
    action_dim = 8

    key = jax.random.PRNGKey(0)
    k_s, k_p = jax.random.split(key)

    s = jax.random.normal(k_s, (batch, state_dim), dtype=jnp.float32)
    params = make_params(k_p, state_dim, hidden_width, action_dim)

    alpha, beta = actor_beta_forward(s, params)
    jax.block_until_ready((alpha, beta))

    a_ref, b_ref = actor_beta_ref(s, params)
    assert alpha.shape == (batch, action_dim) and beta.shape == (batch, action_dim)
    # bf16 matmul operands -> slightly looser tolerance vs the f32 reference.
    assert jnp.allclose(alpha, a_ref, atol=3e-2, rtol=3e-2)
    assert jnp.allclose(beta, b_ref, atol=3e-2, rtol=3e-2)
    # Beta-distribution parameters must be > 1 by construction (softplus + 1)
    assert bool(jnp.all(alpha > 1.0)) and bool(jnp.all(beta > 1.0))

    print("KERNEL_OK")
</pallas_src>

<mosaic_0001>
module attributes {stable_mosaic.version = 11 : i64} {
  func.func @actor_beta_kernel(%arg0: i32, %arg1: memref<8x16xf32, #tpu.memory_space<vmem>>, %arg2: memref<16x32xbf16, #tpu.memory_space<vmem>>, %arg3: memref<1x32xf32, #tpu.memory_space<vmem>>, %arg4: memref<32x32xbf16, #tpu.memory_space<vmem>>, %arg5: memref<1x32xf32, #tpu.memory_space<vmem>>, %arg6: memref<32x16xbf16, #tpu.memory_space<vmem>>, %arg7: memref<1x16xf32, #tpu.memory_space<vmem>>, %arg8: memref<8x16xf32, #tpu.memory_space<vmem>>) attributes {dimension_semantics = [#tpu.dimension_semantics<parallel>], iteration_bounds = array<i64: 1>, scalar_prefetch = 0 : i64, scratch_operands = 0 : i64, tpu.core_type = #tpu.core_type<tc>, window_params = [{transform_indices = @transform_0, window_bounds = array<i64: 8, 16>}, {pipeline_mode = #tpu.pipeline_mode<synchronous>, transform_indices = @transform_1, window_bounds = array<i64: 16, 32>}, {pipeline_mode = #tpu.pipeline_mode<synchronous>, transform_indices = @transform_2, window_bounds = array<i64: 1, 32>}, {pipeline_mode = #tpu.pipeline_mode<synchronous>, transform_indices = @transform_3, window_bounds = array<i64: 32, 32>}, {pipeline_mode = #tpu.pipeline_mode<synchronous>, transform_indices = @transform_4, window_bounds = array<i64: 1, 32>}, {pipeline_mode = #tpu.pipeline_mode<synchronous>, transform_indices = @transform_5, window_bounds = array<i64: 32, 16>}, {pipeline_mode = #tpu.pipeline_mode<synchronous>, transform_indices = @transform_6, window_bounds = array<i64: 1, 16>}, {transform_indices = @transform_7, window_bounds = array<i64: 8, 16>}]} {
    %c0 = arith.constant 0 : index
    %c0_0 = arith.constant 0 : index
    %0 = vector.load %arg1[%c0, %c0_0] : memref<8x16xf32, #tpu.memory_space<vmem>>, vector<8x16xf32>
    %1 = arith.truncf %0 : vector<8x16xf32> to vector<8x16xbf16>
    %c0_1 = arith.constant 0 : index
    %c0_2 = arith.constant 0 : index
    %2 = vector.load %arg2[%c0_1, %c0_2] : memref<16x32xbf16, #tpu.memory_space<vmem>>, vector<16x32xbf16>
    %cst = arith.constant dense<0.000000e+00> : vector<8x32xf32>
    %3 = tpu.matmul %1, %2, %cst {dimension_numbers = #tpu.dot_dimension_numbers<[1], [0], [0], [1], [0, 0, 1, 1], [], []>} : vector<8x16xbf16>, vector<16x32xbf16>, vector<8x32xf32> -> vector<8x32xf32>
    %c0_3 = arith.constant 0 : index
    %c0_4 = arith.constant 0 : index
    %4 = vector.load %arg3[%c0_3, %c0_4] : memref<1x32xf32, #tpu.memory_space<vmem>>, vector<1x32xf32>
    %5 = vector.broadcast %4 : vector<1x32xf32> to vector<8x32xf32>
    %6 = arith.addf %3, %5 : vector<8x32xf32>
    %7 = math.tanh %6 : vector<8x32xf32>
    %8 = arith.truncf %7 : vector<8x32xf32> to vector<8x32xbf16>
    %c0_5 = arith.constant 0 : index
    %c0_6 = arith.constant 0 : index
    %9 = vector.load %arg4[%c0_5, %c0_6] : memref<32x32xbf16, #tpu.memory_space<vmem>>, vector<32x32xbf16>
    %cst_7 = arith.constant dense<0.000000e+00> : vector<8x32xf32>
    %10 = tpu.matmul %8, %9, %cst_7 {dimension_numbers = #tpu.dot_dimension_numbers<[1], [0], [0], [1], [0, 0, 1, 1], [], []>} : vector<8x32xbf16>, vector<32x32xbf16>, vector<8x32xf32> -> vector<8x32xf32>
    %c0_8 = arith.constant 0 : index
    %c0_9 = arith.constant 0 : index
    %11 = vector.load %arg5[%c0_8, %c0_9] : memref<1x32xf32, #tpu.memory_space<vmem>>, vector<1x32xf32>
    %12 = vector.broadcast %11 : vector<1x32xf32> to vector<8x32xf32>
    %13 = arith.addf %10, %12 : vector<8x32xf32>
    %14 = math.tanh %13 : vector<8x32xf32>
    %15 = arith.truncf %14 : vector<8x32xf32> to vector<8x32xbf16>
    %c0_10 = arith.constant 0 : index
    %c0_11 = arith.constant 0 : index
    %16 = vector.load %arg6[%c0_10, %c0_11] : memref<32x16xbf16, #tpu.memory_space<vmem>>, vector<32x16xbf16>
    %cst_12 = arith.constant dense<0.000000e+00> : vector<8x16xf32>
    %17 = tpu.matmul %15, %16, %cst_12 {dimension_numbers = #tpu.dot_dimension_numbers<[1], [0], [0], [1], [0, 0, 1, 1], [], []>} : vector<8x32xbf16>, vector<32x16xbf16>, vector<8x16xf32> -> vector<8x16xf32>
    %c0_13 = arith.constant 0 : index
    %c0_14 = arith.constant 0 : index
    %18 = vector.load %arg7[%c0_13, %c0_14] : memref<1x16xf32, #tpu.memory_space<vmem>>, vector<1x16xf32>
    %19 = vector.broadcast %18 : vector<1x16xf32> to vector<8x16xf32>
    %20 = arith.addf %17, %19 : vector<8x16xf32>
    %cst_15 = arith.constant 0.000000e+00 : f32
    %21 = vector.broadcast %cst_15 : f32 to vector<8x16xf32>
    %22 = arith.maximumf %20, %21 : vector<8x16xf32>
    %23 = vector.broadcast %cst_15 : f32 to vector<8x16xf32>
    %24 = arith.subf %20, %23 : vector<8x16xf32>
    %25 = arith.cmpf one, %24, %24 : vector<8x16xf32>
    %26 = vector.broadcast %cst_15 : f32 to vector<8x16xf32>
    %27 = arith.addf %20, %26 : vector<8x16xf32>
    %28 = math.absf %24 : vector<8x16xf32>
    %cst_16 = arith.constant 0.000000e+00 : f32
    %29 = vector.broadcast %cst_16 : f32 to vector<8x16xf32>
    %30 = arith.subf %29, %28 : vector<8x16xf32>
    %31 = math.exp %30 : vector<8x16xf32>
    %32 = math.log1p %31 : vector<8x16xf32>
    %33 = arith.addf %22, %32 : vector<8x16xf32>
    %34 = arith.select %25, %27, %33 : vector<8x16xi1>, vector<8x16xf32>
    %cst_17 = arith.constant 1.000000e+00 : f32
    %35 = vector.broadcast %cst_17 : f32 to vector<8x16xf32>
    %36 = arith.addf %34, %35 : vector<8x16xf32>
    %c0_18 = arith.constant 0 : index
    %c0_19 = arith.constant 0 : index
    %37 = vector.load %arg8[%c0_18, %c0_19] : memref<8x16xf32, #tpu.memory_space<vmem>>, vector<8x16xf32>
    tpu.vector_store %arg8[%c0_18, %c0_19], %36 {strides = array<i32>} : memref<8x16xf32, #tpu.memory_space<vmem>>, vector<8x16xf32>,
    return
  }
  func.func @transform_0(%arg0: i32) -> (i32, i32) {
    %c0_i32 = arith.constant 0 : i32
    %c0_i32_0 = arith.constant 0 : i32
    return %arg0, %c0_i32 : i32, i32
  }
  func.func @transform_1(%arg0: i32) -> (i32, i32) {
    %c0_i32 = arith.constant 0 : i32
    %c0_i32_0 = arith.constant 0 : i32
    %c0_i32_1 = arith.constant 0 : i32
    return %c0_i32, %c0_i32_0 : i32, i32
  }
  func.func @transform_2(%arg0: i32) -> (i32, i32) {
    %c0_i32 = arith.constant 0 : i32
    %c0_i32_0 = arith.constant 0 : i32
    %c0_i32_1 = arith.constant 0 : i32
    return %c0_i32, %c0_i32_0 : i32, i32
  }
  func.func @transform_3(%arg0: i32) -> (i32, i32) {
    %c0_i32 = arith.constant 0 : i32
    %c0_i32_0 = arith.constant 0 : i32
    %c0_i32_1 = arith.constant 0 : i32
    return %c0_i32, %c0_i32_0 : i32, i32
  }
  func.func @transform_4(%arg0: i32) -> (i32, i32) {
    %c0_i32 = arith.constant 0 : i32
    %c0_i32_0 = arith.constant 0 : i32
    %c0_i32_1 = arith.constant 0 : i32
    return %c0_i32, %c0_i32_0 : i32, i32
  }
  func.func @transform_5(%arg0: i32) -> (i32, i32) {
    %c0_i32 = arith.constant 0 : i32
    %c0_i32_0 = arith.constant 0 : i32
    %c0_i32_1 = arith.constant 0 : i32
    return %c0_i32, %c0_i32_0 : i32, i32
  }
  func.func @transform_6(%arg0: i32) -> (i32, i32) {
    %c0_i32 = arith.constant 0 : i32
    %c0_i32_0 = arith.constant 0 : i32
    %c0_i32_1 = arith.constant 0 : i32
    return %c0_i32, %c0_i32_0 : i32, i32
  }
  func.func @transform_7(%arg0: i32) -> (i32, i32) {
    %c0_i32 = arith.constant 0 : i32
    %c0_i32_0 = arith.constant 0 : i32
    return %arg0, %c0_i32 : i32, i32
  }
}

</mosaic_0001>

<llo_original>
// kernel: tpu_custom_call.1
$region0: #{tpu_custom_call.1}
  #allocation0 [shape = 'u32[]', space=smem, size = 0x4, offset = 0x4, fixed_abs, tag = 'smem constant byte address 0x4 - core index']
  #allocation1 [shape = 'u32[144,128]{1,0:T(1,128)}', space=vmem, size = 0x12000, scoped, tag = 'internal scratch']
  %s0 = inlined_call_operand.vmem [shape: f32[8,16], index: 0, kind: input, shape index: {}]
  %s1 = inlined_call_operand.hbm [shape: bf16[16,32], index: 1, kind: input, shape index: {}]
  %s2 = inlined_call_operand.vmem [shape: f32[1,32], index: 2, kind: input, shape index: {}]
  %s3 = inlined_call_operand.vmem [shape: bf16[32,32], index: 3, kind: input, shape index: {}]
  %s4 = inlined_call_operand.vmem [shape: f32[1,32], index: 4, kind: input, shape index: {}]
  %s5 = inlined_call_operand.vmem [shape: bf16[32,16], index: 5, kind: input, shape index: {}]
  %s6 = inlined_call_operand.vmem [shape: f32[1,16], index: 6, kind: input, shape index: {}]
  %s7 = inlined_call_operand.hbm [shape: f32[8,16], index: 7, kind: output, shape index: {}]
  %s8 = sld [smem:[#allocation0]]
  $region42: #{tpu_custom_call.1} parent=0
    _
  %s10 = ssub.s32 1, %s8
  %s11 = scalar_select 0, %s10, %s8
  $region1: #{tpu_custom_call.1} parent=0
    #allocation2 [shape = 'u8[4096]{0}', space=vmem, size = 0x1000, scoped, tag = 'input window, operand 1, single buffered']
    #allocation3 [shape = 's32[1]{0}', space=sflag, size = 0x4, scoped, tag = 'scoped memory for tpu_custom_call.1']
    #allocation4 [shape = 's32[1]{0}', space=sflag, size = 0x4, scoped, tag = 'scoped memory for tpu_custom_call.1']
    #allocation5 [shape = 'u8[4096]{0}', space=vmem, size = 0x1000, scoped, tag = 'output window, operand 0, single buffered']
    %12 = vsyncpa [#allocation3], 0
    %13 = vsyncpa [#allocation4], 0
    // Predicated region
    $region2: #{tpu_custom_call.1} parent=1 // pred_check
      _
    $region3: #{tpu_custom_call.1} parent=1 // pred_check_branch
      %15 = sbr.rel (0) target = $region5
    $region4: #{tpu_custom_call.1} parent=1 // pred_region
      _
    $region5: #{tpu_custom_call.1} parent=1 // pred_fallthru
      _
    // Predicated region
    $region6: #{tpu_custom_call.1} parent=1 // pred_check
      _
    $region7: #{tpu_custom_call.1} parent=1 // pred_check_branch
      %17 = sbr.rel (0) target = $region9
    $region8: #{tpu_custom_call.1} parent=1 // pred_region
      %s19 = ssub.s32 128, 128
      %20 = vsyncadd [#allocation3], %s19
      %s21 = sshll.u32 [#allocation2], 4
      %s22 = int_to_ptr.vmem [resolvable:$true] %s21
      %27 = dma.hbm_to_vmem [thread:$0]  %s1, 128, %s22, [#allocation3], 64, 64, 4
    $region9: #{tpu_custom_call.1} parent=1 // pred_fallthru
      _
    // Predicated region
    $region10: #{tpu_custom_call.1} parent=1 // pred_check
      _
    $region11: #{tpu_custom_call.1} parent=1 // pred_check_branch
      %29 = sbr.rel (0) target = $region13
    $region12: #{tpu_custom_call.1} parent=1 // pred_region
      _
    $region13: #{tpu_custom_call.1} parent=1 // pred_fallthru
      _
    // Predicated region
    $region14: #{tpu_custom_call.1} parent=1 // pred_check
      _
    $region15: #{tpu_custom_call.1} parent=1 // pred_check_branch
      %31 = sbr.rel (0) target = $region17
    $region16: #{tpu_custom_call.1} parent=1 // pred_region
      _
    $region17: #{tpu_custom_call.1} parent=1 // pred_fallthru
      _
    // Predicated region
    $region18: #{tpu_custom_call.1} parent=1 // pred_check
      _
    $region19: #{tpu_custom_call.1} parent=1 // pred_check_branch
      %33 = sbr.rel (0) target = $region21
    $region20: #{tpu_custom_call.1} parent=1 // pred_region
      _
    $region21: #{tpu_custom_call.1} parent=1 // pred_fallthru
      _
    // Predicated region
    $region22: #{tpu_custom_call.1} parent=1 // pred_check
      _
    $region23: #{tpu_custom_call.1} parent=1 // pred_check_branch
      %35 = sbr.rel (0) target = $region25
    $region24: #{tpu_custom_call.1} parent=1 // pred_region
      _
    $region25: #{tpu_custom_call.1} parent=1 // pred_fallthru
      _
    // Predicated region
    $region26: #{tpu_custom_call.1} parent=1 // pred_check
      _
    $region27: #{tpu_custom_call.1} parent=1 // pred_check_branch
      %37 = sbr.rel (0) target = $region29
    $region28: #{tpu_custom_call.1} parent=1 // pred_region
      _
    $region29: #{tpu_custom_call.1} parent=1 // pred_fallthru
      _
    // Predicated region
    $region30: #{tpu_custom_call.1} parent=1 // pred_check
      _
    $region31: #{tpu_custom_call.1} parent=1 // pred_check_branch
      %39 = sbr.rel (0) target = $region33
    $region32: #{tpu_custom_call.1} parent=1 // pred_region
      %40 = dma.done [#allocation3], 128
    $region33: #{tpu_custom_call.1} parent=1 // pred_fallthru
      _
    %v42 = vld [vmem:[%s0] sm:$0xff]
    %v43 = vpack.c.bf16 %v42, %v42
    %v44 = vld [vmem:[#allocation2] sm:$0xf]
    %v45 = vld [vmem:[#allocation2 + $0x4] sm:$0xf]
    %v46 = vld [vmem:[%s2] sm:$0x1]
    %v48 = vlaneseq
    %v49 = vshrl.u32 %v48, 7
    %v50 = vsub.s32 0, %v49
    %v51 = vrot.slane %v46, %v50
    %v55 = vunpack.c.l.b16 %v44
    %v56 = vunpack.c.l.b16 %v45
    %v57 = vpack.c.b16 %v56, %v55
    %vm59 = vcmask 130048
    %v61 = vsel %vm59, %v43, 0
    %63 = vmatprep.subr.bf16.mxu0 0
    %64 = vmatpush1.bf16.msra.mxu0 %v57
    %65 = vmatprep.subr.bf16.mxu0 0
    %66 = vmatpush1.bf16.msra.mxu0 0
    %67 = vmatprep.subr.bf16.mxu0 0
    %68 = vmatpush1.bf16.msra.mxu0 0
    %69 = vmatprep.subr.bf16.mxu0 0
    %70 = vmatpush1.bf16.msra.mxu0 0
    %71 = vmatprep.subr.bf16.mxu0 0
    %72 = vmatpush1.bf16.msra.mxu0 0
    %73 = vmatprep.subr.bf16.mxu0 0
    %74 = vmatpush1.bf16.msra.mxu0 0
    %75 = vmatprep.subr.bf16.mxu0 0
    %76 = vmatpush1.bf16.msra.mxu0 0
    %77 = vmatprep.subr.bf16.mxu0 0
    %78 = vmatpush1.bf16.msra.mxu0 0
    %79 = vmatprep.subr.bf16.mxu0 0
    %80 = vmatpush1.bf16.msra.mxu0 0
    %81 = vmatprep.subr.bf16.mxu0 0
    %82 = vmatpush1.bf16.msra.mxu0 0
    %83 = vmatprep.subr.bf16.mxu0 0
    %84 = vmatpush1.bf16.msra.mxu0 0
    %85 = vmatprep.subr.bf16.mxu0 0
    %86 = vmatpush1.bf16.msra.mxu0 0
    %87 = vmatprep.subr.bf16.mxu0 0
    %88 = vmatpush1.bf16.msra.mxu0 0
    %89 = vmatprep.subr.bf16.mxu0 0
    %90 = vmatpush1.bf16.msra.mxu0 0
    %91 = vmatprep.subr.bf16.mxu0 0
    %92 = vmatpush1.bf16.msra.mxu0 0
    %93 = vmatprep.subr.bf16.mxu0 0
    %94 = vmatpush1.bf16.msra.mxu0 0
    %95 = vmatprep.mubr.bf16.mxu0 0
    %96 = vmatmul.mubr.bf16.gmra.mrb[0].mxu0 %v61
    %v97 = vpop.f32.mrb[0].mxu0
    %v98 = vadd.f32 %v51, %v97
    %v99 = vpop.f32.mrb[0].mxu0
    %v100 = vpop.f32.mrb[0].mxu0
    %v101 = vpop.f32.mrb[0].mxu0
    %102 = vdwg.mxu0
    %v103 = vtanh.pop %v98
    %v104 = vpack.c.bf16 %v103, %v103
    %v105 = vld [vmem:[%s3] sm:$0xf]
    %v106 = vld [vmem:[%s3 + $0x4] sm:$0xf]
    %v107 = vld [vmem:[%s3 + $0x8] sm:$0xf]
    %v108 = vld [vmem:[%s3 + $0xc] sm:$0xf]
    %v109 = vld [vmem:[%s4] sm:$0x1]
    %v111 = vlaneseq
    %v112 = vshrl.u32 %v111, 7
    %v113 = vsub.s32 0, %v112
    %v114 = vrot.slane %v109, %v113
    %v120 = vunpack.c.l.b16 %v105
    %v121 = vunpack.c.l.b16 %v106
    %v122 = vunpack.c.l.b16 %v107
    %v123 = vunpack.c.l.b16 %v108
    %v124 = vpack.c.b16 %v121, %v120
    %v125 = vpack.c.b16 %v123, %v122
    %vm128 = vcmask 261120
    %v130 = vsel %vm128, %v104, 0
    %132 = vmatprep.subr.bf16.mxu0 0
    %133 = vmatpush1.bf16.msra.mxu0 %v124
    %134 = vmatprep.subr.bf16.mxu0 0
    %135 = vmatpush1.bf16.msra.mxu0 %v125
    %136 = vmatprep.subr.bf16.mxu0 0
    %137 = vmatpush1.bf16.msra.mxu0 0
    %138 = vmatprep.subr.bf16.mxu0 0
    %139 = vmatpush1.bf16.msra.mxu0 0
    %140 = vmatprep.subr.bf16.mxu0 0
    %141 = vmatpush1.bf16.msra.mxu0 0
    %142 = vmatprep.subr.bf16.mxu0 0
    %143 = vmatpush1.bf16.msra.mxu0 0
    %144 = vmatprep.subr.bf16.mxu0 0
    %145 = vmatpush1.bf16.msra.mxu0 0
    %146 = vmatprep.subr.bf16.mxu0 0
    %147 = vmatpush1.bf16.msra.mxu0 0
    %148 = vmatprep.subr.bf16.mxu0 0
    %149 = vmatpush1.bf16.msra.mxu0 0
    %150 = vmatprep.subr.bf16.mxu0 0
    %151 = vmatpush1.bf16.msra.mxu0 0
    %152 = vmatprep.subr.bf16.mxu0 0
    %153 = vmatpush1.bf16.msra.mxu0 0
    %154 = vmatprep.subr.bf16.mxu0 0
    %155 = vmatpush1.bf16.msra.mxu0 0
    %156 = vmatprep.subr.bf16.mxu0 0
    %157 = vmatpush1.bf16.msra.mxu0 0
    %158 = vmatprep.subr.bf16.mxu0 0
    %159 = vmatpush1.bf16.msra.mxu0 0
    %160 = vmatprep.subr.bf16.mxu0 0
    %161 = vmatpush1.bf16.msra.mxu0 0
    %162 = vmatprep.subr.bf16.mxu0 0
    %163 = vmatpush1.bf16.msra.mxu0 0
    %164 = vmatprep.mubr.bf16.mxu0 0
    %165 = vmatmul.mubr.bf16.gmra.mrb[0].mxu0 %v130
    %v166 = vpop.f32.mrb[0].mxu0
    %v167 = vadd.f32 %v114, %v166
    %v168 = vpop.f32.mrb[0].mxu0
    %v169 = vpop.f32.mrb[0].mxu0
    %v170 = vpop.f32.mrb[0].mxu0
    %171 = vdwg.mxu0
    %v172 = vtanh.pop %v167
    %v173 = vpack.c.bf16 %v172, %v172
    %v174 = vld [vmem:[%s5] sm:$0xf]
    %v175 = vld [vmem:[%s5 + $0x4] sm:$0xf]
    %v176 = vld [vmem:[%s5 + $0x8] sm:$0xf]
    %v177 = vld [vmem:[%s5 + $0xc] sm:$0xf]
    %v178 = vld [vmem:[%s6] sm:$0x1]
    %v180 = vlaneseq
    %v181 = vshrl.u32 %v180, 7
    %v182 = vsub.s32 0, %v181
    %v183 = vrot.slane %v178, %v182
    %v189 = vunpack.c.l.b16 %v174
    %v190 = vunpack.c.l.b16 %v175
    %v191 = vunpack.c.l.b16 %v176
    %v192 = vunpack.c.l.b16 %v177
    %v193 = vpack.c.b16 %v190, %v189
    %v194 = vpack.c.b16 %v192, %v191
    %v198 = vsel %vm128, %v173, 0
    %200 = vmatprep.subr.bf16.mxu0 0
    %201 = vmatpush1.bf16.msra.mxu0 %v193
    %202 = vmatprep.subr.bf16.mxu0 0
    %203 = vmatpush1.bf16.msra.mxu0 %v194
    %204 = vmatprep.subr.bf16.mxu0 0
    %205 = vmatpush1.bf16.msra.mxu0 0
    %206 = vmatprep.subr.bf16.mxu0 0
    %207 = vmatpush1.bf16.msra.mxu0 0
    %208 = vmatprep.subr.bf16.mxu0 0
    %209 = vmatpush1.bf16.msra.mxu0 0
    %210 = vmatprep.subr.bf16.mxu0 0
    %211 = vmatpush1.bf16.msra.mxu0 0
    %212 = vmatprep.subr.bf16.mxu0 0
    %213 = vmatpush1.bf16.msra.mxu0 0
    %214 = vmatprep.subr.bf16.mxu0 0
    %215 = vmatpush1.bf16.msra.mxu0 0
    %216 = vmatprep.subr.bf16.mxu0 0
    %217 = vmatpush1.bf16.msra.mxu0 0
    %218 = vmatprep.subr.bf16.mxu0 0
    %219 = vmatpush1.bf16.msra.mxu0 0
    %220 = vmatprep.subr.bf16.mxu0 0
    %221 = vmatpush1.bf16.msra.mxu0 0
    %222 = vmatprep.subr.bf16.mxu0 0
    %223 = vmatpush1.bf16.msra.mxu0 0
    %224 = vmatprep.subr.bf16.mxu0 0
    %225 = vmatpush1.bf16.msra.mxu0 0
    %226 = vmatprep.subr.bf16.mxu0 0
    %227 = vmatpush1.bf16.msra.mxu0 0
    %228 = vmatprep.subr.bf16.mxu0 0
    %229 = vmatpush1.bf16.msra.mxu0 0
    %230 = vmatprep.subr.bf16.mxu0 0
    %231 = vmatpush1.bf16.msra.mxu0 0
    %232 = vmatprep.mubr.bf16.mxu0 0
    %233 = vmatmul.mubr.bf16.gmra.mrb[0].mxu0 %v198
    %v234 = vpop.f32.mrb[0].mxu0
    %v235 = vadd.f32 %v183, %v234
    %v236 = vpop.f32.mrb[0].mxu0
    %v237 = vpop.f32.mrb[0].mxu0
    %v238 = vpop.f32.mrb[0].mxu0
    %239 = vdwg.mxu0
    %v240 = vmax.f32 %v235, 0.0
    %vm241 = vcmp.ne.f32.partialorder %v235, %v235
    %v242 = vadd.f32 %v235, 0.0
    %v243 = vand.u32 2147483647, %v235
    %v244 = vsub.f32 0.0, %v243
    %v245 = vmul.f32 %v244, 1.442695
    %v246 = vpow.pop %v245
    %v247 = vadd.f32 %v246, 1.0
    %v248 = vlog2.pop %v247
    %v249 = vmul.f32 %v248, 0.6931472
    %v250 = vmul.f32 -0.5, %v246
    %v251 = vadd.f32 %v250, 1.0
    %v252 = vmul.f32 %v251, %v246
    %v253 = vand.u32 2147483647, %v246
    %vm254 = vcmp.lt.f32.partialorder %v253, 0.0004427343
    %v255 = vsel %vm254, %v252, %v249
    %v256 = vadd.f32 %v240, %v255
    %v257 = vsel %vm241, %v242, %v256
    %v258 = vadd.f32 %v257, 1.0
    %259 = vst.msk [vmem:[#allocation5] sm:$0xff] %vm59, %v258
    // Predicated region
    $region34: #{tpu_custom_call.1} parent=1 // pred_check
      _
    $region35: #{tpu_custom_call.1} parent=1 // pred_check_branch
      %261 = sbr.rel (0) target = $region37
    $region36: #{tpu_custom_call.1} parent=1 // pred_region
      %s263 = ssub.s32 128, 128
      %264 = vsyncadd [#allocation4], %s263
      %s266 = sshll.u32 [#allocation5], 4
      %s267 = int_to_ptr.vmem [resolvable:$true] %s266
      %269 = dma.vmem_to_hbm [thread:$0]  %s267, 128, %s7, [#allocation4]
    $region37: #{tpu_custom_call.1} parent=1 // pred_fallthru
      _
    // Predicated region
    $region38: #{tpu_custom_call.1} parent=1 // pred_check
      _
    $region39: #{tpu_custom_call.1} parent=1 // pred_check_branch
      %271 = sbr.rel (0) target = $region41
    $region40: #{tpu_custom_call.1} parent=1 // pred_region
      %272 = dma.done [#allocation4], 128
    $region41: #{tpu_custom_call.1} parent=1 // pred_fallthru
      _
    %273 = vsyncpa [#allocation3], 1
    %274 = vsyncpa [#allocation4], 1

</llo_original>
